<compile_context>
chip_gen: v7x
topology: tpu7x:2x2x1
jax: 0.10.0
libtpu: 0.0.40
codegen_flags: <defaults>
</compile_context>

<pallas_src>
import functools

import jax
import jax.numpy as jnp
from jax.experimental import pallas as pl
from jax.experimental.pallas import tpu as pltpu

_LANE = 128
_SUBLANE = 8  # f32 sublane granularity for the batch tile


def _round_up(n, m):
    return ((n + m - 1) // m) * m


def _cdiv(a, b):
    return -(-a // b)


# ---------------------------------------------------------------------------
# Kernel
# ---------------------------------------------------------------------------
def crossnet_kernel(x_ref, w_ref, b_ref, o_ref):
    # x_ref : (TB, Dp)            activation tile (f32 or bf16)
    # w_ref : (n_cross, Dp, Dp)   weights, pre-transposed to (in, out), grid-invariant
    # b_ref : (n_cross, 1, Dp)    f32 biases (row layout -> sublane broadcast)
    # o_ref : (TB, Dp)
    x0 = x_ref[...].astype(jnp.float32)
    xi = x0
    n_cross = w_ref.shape[0]
    for i in range(n_cross):  # small static trip count -> unrolled at trace time
        lin = jnp.dot(
            xi.astype(w_ref.dtype), w_ref[i],
            preferred_element_type=jnp.float32,
        ) + b_ref[i]
        xi = x0 * lin + xi
    o_ref[...] = xi.astype(o_ref.dtype)


# ---------------------------------------------------------------------------
# One-time parameter preparation (hoisted out of the per-call hot path)
# ---------------------------------------------------------------------------
def prepare_crossnet_params(weights, biases, *, param_dtype=jnp.bfloat16):
    """weights: (n_cross, D, D) in torch nn.Linear layout (out, in); biases: (n_cross, D).

    Returns (w_t, b): w_t (n_cross, Dp, Dp) in (in, out) layout cast to
    param_dtype, b (n_cross, 1, Dp) f32, with Dp = D rounded up to 128.
    Padded rows/cols are zero so padded output columns stay exactly zero.
    """
    n_cross, d_out, d_in = weights.shape
    assert d_out == d_in, "CrossNetMatrix uses square d_in x d_in weights"
    dp = _round_up(d_in, _LANE)
    w_t = jnp.transpose(weights, (0, 2, 1))  # (n_cross, in, out): kernel does xi @ Wt
    if dp != d_in:
        w_t = jnp.pad(w_t, ((0, 0), (0, dp - d_in), (0, dp - d_out)))
        biases = jnp.pad(biases, ((0, 0), (0, dp - d_out)))
    b = biases.astype(jnp.float32).reshape(n_cross, 1, dp)
    return w_t.astype(param_dtype), b


# ---------------------------------------------------------------------------
# Chip / capability probes (cached, evaluated once)
# ---------------------------------------------------------------------------
@functools.lru_cache(maxsize=None)
def _vmem_budget_bytes():
    """~75% of the per-core VMEM capacity (v5e/v6e: 128 MiB, v7x: 64 MiB)."""
    try:
        cap = int(pltpu.get_tpu_info().vmem_capacity_bytes)
    except Exception:  # capability query only; fall back to v7x-safe size
        cap = 64 << 20
    return int(0.75 * cap)


@functools.lru_cache(maxsize=None)
def _single_buffer_mode():
    """Return a pl.Buffered(1) pipeline mode if supported end-to-end, else None.

    Probed once with a tiny compile instead of a per-call blanket except/retry.
    """
    try:
        try:
            mode = pl.Buffered(buffer_count=1)
        except TypeError:
            mode = pl.Buffered(1)
        param_spec = pl.BlockSpec((8, 128), lambda i: (0, 0), pipeline_mode=mode)
    except Exception:
        return None

    def _probe(a_ref, p_ref, o_ref):
        o_ref[...] = a_ref[...] + p_ref[...]

    try:
        fn = pl.pallas_call(
            _probe,
            out_shape=jax.ShapeDtypeStruct((16, 128), jnp.float32),
            grid_spec=pltpu.PrefetchScalarGridSpec(
                num_scalar_prefetch=0,
                grid=(2,),
                in_specs=[pl.BlockSpec((8, 128), lambda i: (i, 0)), param_spec],
                out_specs=pl.BlockSpec((8, 128), lambda i: (i, 0)),
            ),
        )
        jax.jit(fn).lower(
            jnp.zeros((16, 128), jnp.float32), jnp.zeros((8, 128), jnp.float32)
        ).compile()
        return mode
    except Exception:  # capability probe only — fall back to default buffering
        return None


# ---------------------------------------------------------------------------
# Call construction (cached per shape) and tile sizing
# ---------------------------------------------------------------------------
def _pick_batch_tile(B, dp, n_cross, requested, in_dtype, out_dtype, w_dtype):
    budget = _vmem_budget_bytes()
    param_mult = 1 if _single_buffer_mode() is not None else 2
    param_bytes = param_mult * n_cross * dp * (dp * w_dtype.itemsize + 4)
    # double-buffered I/O tiles + ~4 f32 temporaries per row of the residual chain
    per_row = dp * (2 * (in_dtype.itemsize + out_dtype.itemsize) + 4 * 4)
    avail = max(budget - param_bytes, 0)
    # TODO(synk): if the resident weight slab alone exceeds ~half the budget
    #             (huge Dp / many cross layers), stream layers via an inner
    #             "arbitrary" grid axis with (1, Dp, Dp) weight blocks instead.
    bt = min(int(requested), max(avail // per_row, _SUBLANE))
    bt = min(bt, _round_up(B, _SUBLANE))
    if B > _SUBLANE:
        # keep >= 2 grid steps so the "parallel" axis can shard across v7x's 2 TCs
        bt = min(bt, _round_up(_cdiv(B, 2), _SUBLANE))
    bt = max(_SUBLANE, (bt // _SUBLANE) * _SUBLANE)
    return bt


@functools.lru_cache(maxsize=None)
def _build_call(B, dp, n_cross, bt, in_name, out_name, w_name):
    in_dtype = jnp.dtype(in_name)
    out_dtype = jnp.dtype(out_name)
    w_dtype = jnp.dtype(w_name)

    mode = _single_buffer_mode()
    # Weight/bias block indices are constant across the grid: one buffer is
    # enough, halving the dominant VMEM consumer at realistic D.
    param_kwargs = {"pipeline_mode": mode} if mode is not None else {}
    param_mult = 1 if mode is not None else 2

    grid = (_cdiv(B, bt),)  # ragged last block handled by Pallas write-masking

    in_specs = [
        pl.BlockSpec((bt, dp), lambda i: (i, 0)),
        pl.BlockSpec((n_cross, dp, dp), lambda i: (0, 0, 0), **param_kwargs),
        pl.BlockSpec((n_cross, 1, dp), lambda i: (0, 0, 0), **param_kwargs),
    ]
    out_specs = pl.BlockSpec((bt, dp), lambda i: (i, 0))

    est = (param_mult * n_cross * dp * (dp * w_dtype.itemsize + 4)   # weights + biases
           + 2 * bt * dp * (in_dtype.itemsize + out_dtype.itemsize)  # x / out buffers
           + 4 * bt * dp * 4)                                        # f32 temporaries
    vmem_limit = int(min(max(int(est * 1.25) + (2 << 20), 32 << 20),
                         _vmem_budget_bytes()))

    cost = pl.CostEstimate(
        flops=2 * n_cross * B * dp * dp + 3 * n_cross * B * dp,
        transcendentals=0,
        bytes_accessed=B * dp * (in_dtype.itemsize + out_dtype.itemsize)
        + n_cross * dp * dp * w_dtype.itemsize
        + n_cross * dp * 4,
    )

    return pl.pallas_call(
        crossnet_kernel,
        out_shape=jax.ShapeDtypeStruct((B, dp), out_dtype),
        grid_spec=pltpu.PrefetchScalarGridSpec(
            num_scalar_prefetch=0,
            grid=grid,
            in_specs=in_specs,
            out_specs=out_specs,
        ),
        compiler_params=pltpu.CompilerParams(
            dimension_semantics=("parallel",),
            vmem_limit_bytes=vmem_limit,
        ),
        cost_estimate=cost,
    )


# ---------------------------------------------------------------------------
# Public wrappers
# ---------------------------------------------------------------------------
def cross_net_matrix_prepared(x, w_t, b, *, batch_tile=1024, out_dtype=None):
    """x: (B, D). w_t, b from prepare_crossnet_params (feature dim padded to 128)."""
    B, D = x.shape
    n_cross, dp, _ = w_t.shape
    assert b.shape == (n_cross, 1, dp)

    in_dtype = jnp.dtype(x.dtype)
    out_dtype = jnp.dtype(out_dtype) if out_dtype is not None else in_dtype
    w_dtype = jnp.dtype(w_t.dtype)

    bt = _pick_batch_tile(B, dp, n_cross, batch_tile, in_dtype, out_dtype, w_dtype)
    call = _build_call(B, dp, n_cross, bt, in_dtype.name, out_dtype.name, w_dtype.name)

    if D == dp:
        # Fast path: no wrapper-side pad/slice copies at all.
        return call(x, w_t, b)

    # D not a multiple of 128: zero-pad the feature (K) dim once so padded
    # columns contribute exactly zero to the matmul, slice them back after.
    xp = jnp.pad(x, ((0, 0), (0, dp - D)))
    return call(xp, w_t, b)[:, :D]


def cross_net_matrix(x, weights, biases, *, batch_tile=1024, out_dtype=None):
    """Convenience path: torch-layout f32 params; prefer preparing params once."""
    w_t, b = prepare_crossnet_params(weights, biases)
    return cross_net_matrix_prepared(x, w_t, b, batch_tile=batch_tile,
                                     out_dtype=out_dtype)


def cross_net_matrix_ref(x, weights, biases, *, matmul_dtype=jnp.float32):
    x0 = x.astype(jnp.float32)
    xi = x0
    for i in range(weights.shape[0]):
        lin = jnp.dot(
            xi.astype(matmul_dtype), weights[i].T.astype(matmul_dtype),
            preferred_element_type=jnp.float32,
        ) + biases[i].astype(jnp.float32)
        xi = x0 * lin + xi
    return xi.astype(x.dtype)


# ---------------------------------------------------------------------------
# Demo / self-test
# ---------------------------------------------------------------------------
if __name__ == "__main__":
    key = jax.random.PRNGKey(0)

    # Case 1: small DCN width (D not a multiple of 128 -> padded-feature path).
    B, D, n_cross = 32, 32, 2
    kx, kw, kb = jax.random.split(key, 3)
    x = jax.random.normal(kx, (B, D), dtype=jnp.float32)
    bound = 1.0 / (D ** 0.5)   # deterministic "nn.Linear"-style init
    weights = jax.random.uniform(kw, (n_cross, D, D), jnp.float32, -bound, bound)
    biases = jax.random.uniform(kb, (n_cross, D), jnp.float32, -bound, bound)

    w_t, b = prepare_crossnet_params(weights, biases)   # one-time prep
    out = jax.block_until_ready(cross_net_matrix_prepared(x, w_t, b))
    assert out.shape == (B, D)

    ref_bf16 = cross_net_matrix_ref(x, weights, biases, matmul_dtype=jnp.bfloat16)
    assert jnp.allclose(out, ref_bf16, atol=5e-2, rtol=5e-2), \
        "mismatch vs bf16-matched reference"
    ref_f32 = cross_net_matrix_ref(x, weights, biases)
    assert jnp.allclose(out, ref_f32, atol=2.5e-1, rtol=1e-1), \
        "mismatch vs f32 reference"

    # Case 2: D % 128 == 0 fast path (no wrapper pad/slice) with a ragged batch
    # so the masked last grid block is exercised.
    B2, D2 = 20, 128
    bound2 = 1.0 / (D2 ** 0.5)
    x2 = jax.random.normal(kx, (B2, D2), dtype=jnp.float32)
    w2 = jax.random.uniform(kw, (n_cross, D2, D2), jnp.float32, -bound2, bound2)
    b2 = jax.random.uniform(kb, (n_cross, D2), jnp.float32, -bound2, bound2)
    w2_t, b2_p = prepare_crossnet_params(w2, b2)
    out2 = jax.block_until_ready(cross_net_matrix_prepared(x2, w2_t, b2_p))
    assert out2.shape == (B2, D2)
    ref2 = cross_net_matrix_ref(x2, w2, b2, matmul_dtype=jnp.bfloat16)
    assert jnp.allclose(out2, ref2, atol=5e-2, rtol=5e-2), \
        "fast-path mismatch vs bf16-matched reference"

    print("KERNEL_OK")
</pallas_src>

<mosaic_0001>
module attributes {stable_mosaic.version = 11 : i64} {
  func.func @crossnet_kernel(%arg0: i32, %arg1: memref<16x128xf32, #tpu.memory_space<vmem>>, %arg2: memref<2x128x128xbf16, #tpu.memory_space<vmem>>, %arg3: memref<2x1x128xf32, #tpu.memory_space<vmem>>, %arg4: memref<16x128xf32, #tpu.memory_space<vmem>>) attributes {dimension_semantics = [#tpu.dimension_semantics<parallel>], iteration_bounds = array<i64: 2>, scalar_prefetch = 0 : i64, scratch_operands = 0 : i64, tpu.core_type = #tpu.core_type<tc>, window_params = [{transform_indices = @transform_0, window_bounds = array<i64: 16, 128>}, {pipeline_mode = #tpu.pipeline_mode<synchronous>, transform_indices = @transform_1, window_bounds = array<i64: 2, 128, 128>}, {pipeline_mode = #tpu.pipeline_mode<synchronous>, transform_indices = @transform_2, window_bounds = array<i64: 2, 1, 128>}, {transform_indices = @transform_3, window_bounds = array<i64: 16, 128>}]} {
    %c0 = arith.constant 0 : index
    %c0_0 = arith.constant 0 : index
    %0 = vector.load %arg1[%c0, %c0_0] : memref<16x128xf32, #tpu.memory_space<vmem>>, vector<16x128xf32>
    %1 = arith.truncf %0 : vector<16x128xf32> to vector<16x128xbf16>
    %c0_1 = arith.constant 0 : index
    %c0_2 = arith.constant 0 : index
    %c0_3 = arith.constant 0 : index
    %2 = vector.load %arg2[%c0_1, %c0_2, %c0_3] : memref<2x128x128xbf16, #tpu.memory_space<vmem>>, vector<1x128x128xbf16>
    %3 = vector.shape_cast %2 : vector<1x128x128xbf16> to vector<128x128xbf16>
    %cst = arith.constant dense<0.000000e+00> : vector<16x128xf32>
    %4 = tpu.matmul %1, %3, %cst {dimension_numbers = #tpu.dot_dimension_numbers<[1], [0], [0], [1], [0, 0, 1, 1], [], []>} : vector<16x128xbf16>, vector<128x128xbf16>, vector<16x128xf32> -> vector<16x128xf32>
    %c0_4 = arith.constant 0 : index
    %c0_5 = arith.constant 0 : index
    %c0_6 = arith.constant 0 : index
    %5 = vector.load %arg3[%c0_4, %c0_5, %c0_6] : memref<2x1x128xf32, #tpu.memory_space<vmem>>, vector<1x1x128xf32>
    %6 = vector.shape_cast %5 : vector<1x1x128xf32> to vector<1x128xf32>
    %7 = vector.broadcast %6 : vector<1x128xf32> to vector<16x128xf32>
    %8 = arith.addf %4, %7 : vector<16x128xf32>
    %9 = arith.mulf %0, %8 : vector<16x128xf32>
    %10 = arith.addf %9, %0 : vector<16x128xf32>
    %11 = arith.truncf %10 : vector<16x128xf32> to vector<16x128xbf16>
    %c1 = arith.constant 1 : index
    %c0_7 = arith.constant 0 : index
    %c0_8 = arith.constant 0 : index
    %12 = vector.load %arg2[%c1, %c0_7, %c0_8] : memref<2x128x128xbf16, #tpu.memory_space<vmem>>, vector<1x128x128xbf16>
    %13 = vector.shape_cast %12 : vector<1x128x128xbf16> to vector<128x128xbf16>
    %cst_9 = arith.constant dense<0.000000e+00> : vector<16x128xf32>
    %14 = tpu.matmul %11, %13, %cst_9 {dimension_numbers = #tpu.dot_dimension_numbers<[1], [0], [0], [1], [0, 0, 1, 1], [], []>} : vector<16x128xbf16>, vector<128x128xbf16>, vector<16x128xf32> -> vector<16x128xf32>
    %c1_10 = arith.constant 1 : index
    %c0_11 = arith.constant 0 : index
    %c0_12 = arith.constant 0 : index
    %15 = vector.load %arg3[%c1_10, %c0_11, %c0_12] : memref<2x1x128xf32, #tpu.memory_space<vmem>>, vector<1x1x128xf32>
    %16 = vector.shape_cast %15 : vector<1x1x128xf32> to vector<1x128xf32>
    %17 = vector.broadcast %16 : vector<1x128xf32> to vector<16x128xf32>
    %18 = arith.addf %14, %17 : vector<16x128xf32>
    %19 = arith.mulf %0, %18 : vector<16x128xf32>
    %20 = arith.addf %19, %10 : vector<16x128xf32>
    %c0_13 = arith.constant 0 : index
    %c0_14 = arith.constant 0 : index
    %21 = vector.load %arg4[%c0_13, %c0_14] : memref<16x128xf32, #tpu.memory_space<vmem>>, vector<16x128xf32>
    tpu.vector_store %arg4[%c0_13, %c0_14], %20 {strides = array<i32>} : memref<16x128xf32, #tpu.memory_space<vmem>>, vector<16x128xf32>,
    return
  }
  func.func @transform_0(%arg0: i32) -> (i32, i32) {
    %c0_i32 = arith.constant 0 : i32
    %c0_i32_0 = arith.constant 0 : i32
    return %arg0, %c0_i32 : i32, i32
  }
  func.func @transform_1(%arg0: i32) -> (i32, i32, i32) {
    %c0_i32 = arith.constant 0 : i32
    %c0_i32_0 = arith.constant 0 : i32
    %c0_i32_1 = arith.constant 0 : i32
    %c0_i32_2 = arith.constant 0 : i32
    return %c0_i32, %c0_i32_0, %c0_i32_1 : i32, i32, i32
  }
  func.func @transform_2(%arg0: i32) -> (i32, i32, i32) {
    %c0_i32 = arith.constant 0 : i32
    %c0_i32_0 = arith.constant 0 : i32
    %c0_i32_1 = arith.constant 0 : i32
    %c0_i32_2 = arith.constant 0 : i32
    return %c0_i32, %c0_i32_0, %c0_i32_1 : i32, i32, i32
  }
  func.func @transform_3(%arg0: i32) -> (i32, i32) {
    %c0_i32 = arith.constant 0 : i32
    %c0_i32_0 = arith.constant 0 : i32
    return %arg0, %c0_i32 : i32, i32
  }
}

</mosaic_0001>

<llo_original>
// kernel: tpu_custom_call.1
$region0: #{tpu_custom_call.1}
  #allocation0 [shape = 'u32[]', space=smem, size = 0x4, offset = 0x4, fixed_abs, tag = 'smem constant byte address 0x4 - core index']
  #allocation1 [shape = 'u32[144,128]{1,0:T(1,128)}', space=vmem, size = 0x12000, scoped, tag = 'internal scratch']
  %s0 = inlined_call_operand.hbm [shape: f32[32,128], index: 0, kind: input, shape index: {}]
  %s1 = inlined_call_operand.hbm [shape: bf16[2,128,128], index: 1, kind: input, shape index: {}]
  %s2 = inlined_call_operand.vmem [shape: f32[2,1,128], index: 2, kind: input, shape index: {}]
  %s3 = inlined_call_operand.hbm [shape: f32[32,128], index: 3, kind: output, shape index: {}]
  %s4 = sld [smem:[#allocation0]]
  $region53: #{tpu_custom_call.1} parent=0
    _
  %s6 = ssub.s32 1, %s4
  %s7 = scalar_select 0, %s6, %s4
  $region1: #{tpu_custom_call.1} parent=0
    #allocation2 [shape = 'u8[16384]{0}', space=vmem, size = 0x4000, scoped, tag = 'input window, operand 0']
    #allocation3 [shape = 's32[2]{0}', space=sflag, size = 0x8, scoped, tag = 'scoped memory for tpu_custom_call.1']
    #allocation4 [shape = 's32[2]{0}', space=sflag, size = 0x8, scoped, tag = 'scoped memory for tpu_custom_call.1']
    #allocation5 [shape = 'u8[65536]{0}', space=vmem, size = 0x10000, scoped, tag = 'input window, operand 1, single buffered']
    #allocation6 [shape = 's32[1]{0}', space=sflag, size = 0x4, scoped, tag = 'scoped memory for tpu_custom_call.1']
    #allocation7 [shape = 'u8[16384]{0}', space=vmem, size = 0x4000, scoped, tag = 'output window, operand 0']
    %8 = vsyncpa [#allocation3], 0
    %s9 = scalar_lea.sflag [#allocation3], 1
    %10 = vsyncpa %s9, 0
    %11 = vsyncpa [#allocation6], 0
    %12 = vsyncpa [#allocation4], 0
    %s13 = scalar_lea.sflag [#allocation4], 1
    %14 = vsyncpa %s13, 0
    loop: start=0, step=1, limit=4
    $region2: #{tpu_custom_call.1} parent=1 // loop_pre_header
      _
    $region3: #{tpu_custom_call.1} parent=1 // loop_header
      %s16 = sphi 0, %s20
      %p17 = scmp.ge.s32.totalorder %s16, 4
      %s26 = sphi 0, %s28
      %s29 = sphi 0, %s26
      %s30 = sphi 0, %s29
      %s46 = sphi 0, %s30
      %s50 = sphi 0, %s50
      %s52 = sphi 0, %s50
      %s53 = sphi 0, %s52
      %s67 = sphi 0, %s53
      %s71 = sphi 0, %s71
      %s73 = sphi 0, %s71
      %s74 = sphi 0, %s73
      %s88 = sphi 0, %s74
      %s94 = sphi 0, %s96
      %s97 = sphi 0, %s94
      %s98 = sphi 0, %s97
      %s114 = sphi 0, %s98
    $region4: #{tpu_custom_call.1} parent=1 // loop_header_branch
      %19 = sbr.rel (%p17) target = $region8
    $region5: #{tpu_custom_call.1} parent=1 // loop_body
      %s21 = ssub.s32 %s16, 1
      %s22 = ssub.s32 %s16, 2
      %s23 = sadd.s32 %s16, 1
      %s24 = ssub.s32 %s16, %s23
      %p25 = scmp.eq.s32.totalorder %s24, 0
      %s27 = sadd.s32 %s26, 1
      %s28 = scalar_select %p25, %s26, %s27
      %p31 = pneg %p25
      %p32 = scmp.eq.s32.totalorder %s16, 1
      %p33 = por %p31, %p32
      %p34 = scmp.ne.s32.totalorder %s26, %s29
      %p35 = scmp.eq.s32.totalorder %s16, 0
      %p36 = por %p34, %p35
      %p37 = scmp.ne.s32.totalorder %s26, %s29
      %p38 = scmp.eq.s32.totalorder %s21, 1
      %p39 = por %p37, %p38
      %p40 = scmp.ne.s32.totalorder %s29, %s30
      %p41 = scmp.eq.s32.totalorder %s21, 0
      %p42 = por %p40, %p41
      %p43 = scmp.ne.s32.totalorder %s29, %s30
      %p44 = scmp.eq.s32.totalorder %s22, 1
      %p45 = por %p43, %p44
      %p47 = scmp.ne.s32.totalorder %s30, %s46
      %p48 = scmp.eq.s32.totalorder %s22, 0
      %p49 = por %p47, %p48
      %s51 = sadd.s32 %s50, 1
      %p54 = scmp.eq.s32.totalorder %s16, 1
      %p55 = scmp.ne.s32.totalorder %s50, %s52
      %p56 = scmp.eq.s32.totalorder %s16, 0
      %p57 = por %p55, %p56
      %p58 = scmp.ne.s32.totalorder %s50, %s52
      %p59 = scmp.eq.s32.totalorder %s21, 1
      %p60 = por %p58, %p59
      %p61 = scmp.ne.s32.totalorder %s52, %s53
      %p62 = scmp.eq.s32.totalorder %s21, 0
      %p63 = por %p61, %p62
      %p64 = scmp.ne.s32.totalorder %s52, %s53
      %p65 = scmp.eq.s32.totalorder %s22, 1
      %p66 = por %p64, %p65
      %p68 = scmp.ne.s32.totalorder %s53, %s67
      %p69 = scmp.eq.s32.totalorder %s22, 0
      %p70 = por %p68, %p69
      %s72 = sadd.s32 %s71, 1
      %p75 = scmp.eq.s32.totalorder %s16, 1
      %p76 = scmp.ne.s32.totalorder %s71, %s73
      %p77 = scmp.eq.s32.totalorder %s16, 0
      %p78 = por %p76, %p77
      %p79 = scmp.ne.s32.totalorder %s71, %s73
      %p80 = scmp.eq.s32.totalorder %s21, 1
      %p81 = por %p79, %p80
      %p82 = scmp.ne.s32.totalorder %s73, %s74
      %p83 = scmp.eq.s32.totalorder %s21, 0
      %p84 = por %p82, %p83
      %p85 = scmp.ne.s32.totalorder %s73, %s74
      %p86 = scmp.eq.s32.totalorder %s22, 1
      %p87 = por %p85, %p86
      %p89 = scmp.ne.s32.totalorder %s74, %s88
      %p90 = scmp.eq.s32.totalorder %s22, 0
      %p91 = por %p89, %p90
      %s92 = ssub.s32 %s16, %s23
      %p93 = scmp.eq.s32.totalorder %s92, 0
      %s95 = sadd.s32 %s94, 1
      %s96 = scalar_select %p93, %s94, %s95
      %p99 = pneg %p93
      %p100 = scmp.eq.s32.totalorder %s16, 1
      %p101 = por %p99, %p100
      %p102 = scmp.ne.s32.totalorder %s94, %s97
      %p103 = scmp.eq.s32.totalorder %s16, 0
      %p104 = por %p102, %p103
      %p105 = scmp.ne.s32.totalorder %s94, %s97
      %p106 = scmp.eq.s32.totalorder %s21, 1
      %p107 = por %p105, %p106
      %p108 = scmp.ne.s32.totalorder %s97, %s98
      %p109 = scmp.eq.s32.totalorder %s21, 0
      %p110 = por %p108, %p109
      %p111 = scmp.ne.s32.totalorder %s97, %s98
      %p112 = scmp.eq.s32.totalorder %s22, 1
      %p113 = por %p111, %p112
      %p115 = scmp.ne.s32.totalorder %s98, %s114
      %p116 = scmp.eq.s32.totalorder %s22, 0
      %p117 = por %p115, %p116
      %p118 = scmp.le.s32.totalorder 1, %s16
      %p119 = scmp.lt.s32.totalorder %s16, 3
      %p120 = pnand %p118, %p119
      %p121 = pneg %p120
      // Predicated region
      $region9: #{tpu_custom_call.1} parent=5 // pred_check
        _
      $region10: #{tpu_custom_call.1} parent=5 // pred_check_branch
        %123 = sbr.rel (%p120) target = $region12
      $region11: #{tpu_custom_call.1} parent=5 // pred_region
        %s124 = ssub.s32 %s16, 1
        // Predicated region
        $region13: #{tpu_custom_call.1} parent=11 // pred_check
          %p125 = pneg %p63
        $region14: #{tpu_custom_call.1} parent=11 // pred_check_branch
          %127 = sbr.rel (%p125) target = $region16
        $region15: #{tpu_custom_call.1} parent=11 // pred_region
          %s129 = ssub.s32 2048, 2048
          %130 = vsyncadd [#allocation6], %s129
          %s131 = sshll.u32 [#allocation5], 4
          %s132 = int_to_ptr.vmem [resolvable:$true] %s131
          %137 = dma.hbm_to_vmem [thread:$0]  %s1, 2048, %s132, [#allocation6], 64, 64, 4
        $region16: #{tpu_custom_call.1} parent=11 // pred_fallthru
          _
        // Predicated region
        $region17: #{tpu_custom_call.1} parent=11 // pred_check
          %p138 = pneg %p84
        $region18: #{tpu_custom_call.1} parent=11 // pred_check_branch
          %140 = sbr.rel (%p138) target = $region20
        $region19: #{tpu_custom_call.1} parent=11 // pred_region
          _
        $region20: #{tpu_custom_call.1} parent=11 // pred_fallthru
          _
      $region12: #{tpu_custom_call.1} parent=5 // pred_fallthru
        _
      %p141 = scmp.lt.s32.totalorder %s16, 2
      // Predicated region
      $region21: #{tpu_custom_call.1} parent=5 // pred_check
        %p142 = pneg %p141
      $region22: #{tpu_custom_call.1} parent=5 // pred_check_branch
        %144 = sbr.rel (%p142) target = $region24
      $region23: #{tpu_custom_call.1} parent=5 // pred_region
        // Predicated region
        $region25: #{tpu_custom_call.1} parent=23 // pred_check
          %p145 = pneg %p36
        $region26: #{tpu_custom_call.1} parent=23 // pred_check_branch
          %147 = sbr.rel (%p145) target = $region28
        $region27: #{tpu_custom_call.1} parent=23 // pred_region
          %s148 = sand.u32 %s26, 1
          %s149 = scalar_lea.sflag [#allocation3], %s148
          %s150 = sand.u32 %s26, 1
          %s151 = smul.addr %s150, 16
          %s152 = scalar_lea.vmem [#allocation2], %s151
          %s153 = smul.u32 2, %s16
          %s155 = ssub.s32 256, 256
          %156 = vsyncadd %s149, %s155
          %s157 = smul.addr %s153, 128
          %s158 = scalar_lea.hbm %s0, %s157
          %s159 = sshll.u32 %s152, 4
          %s160 = int_to_ptr.vmem [resolvable:$true] %s159
          %165 = dma.hbm_to_vmem [thread:$0]  %s158, 256, %s160, %s149, 128, 128, 8
        $region28: #{tpu_custom_call.1} parent=23 // pred_fallthru
          _
      $region24: #{tpu_custom_call.1} parent=5 // pred_fallthru
        _
      %p166 = scmp.le.s32.totalorder 1, %s16
      %p167 = scmp.lt.s32.totalorder %s16, 3
      %p168 = pnand %p166, %p167
      %p169 = pneg %p168
      // Predicated region
      $region29: #{tpu_custom_call.1} parent=5 // pred_check
        _
      $region30: #{tpu_custom_call.1} parent=5 // pred_check_branch
        %171 = sbr.rel (%p168) target = $region32
      $region31: #{tpu_custom_call.1} parent=5 // pred_region
        %s172 = ssub.s32 %s16, 1
        %s173 = sand.u32 %s29, 1
        %s174 = scalar_lea.sflag [#allocation3], %s173
        %s175 = sand.u32 %s29, 1
        %s176 = smul.addr %s175, 16
        %s177 = scalar_lea.vmem [#allocation2], %s176
        // Predicated region
        $region33: #{tpu_custom_call.1} parent=31 // pred_check
          %p178 = pneg %p42
        $region34: #{tpu_custom_call.1} parent=31 // pred_check_branch
          %180 = sbr.rel (%p178) target = $region36
        $region35: #{tpu_custom_call.1} parent=31 // pred_region
          %181 = dma.done %s174, 256
        $region36: #{tpu_custom_call.1} parent=31 // pred_fallthru
          _
        // Predicated region
        $region37: #{tpu_custom_call.1} parent=31 // pred_check
          %p182 = pneg %p63
        $region38: #{tpu_custom_call.1} parent=31 // pred_check_branch
          %184 = sbr.rel (%p182) target = $region40
        $region39: #{tpu_custom_call.1} parent=31 // pred_region
          %185 = dma.done [#allocation6], 2048
        $region40: #{tpu_custom_call.1} parent=31 // pred_fallthru
          _
        %s186 = sand.u32 %s29, 1
        %s187 = scalar_lea.sflag [#allocation3], %s186
        %s188 = sand.u32 %s29, 1
        %s189 = smul.addr %s188, 16
        %s190 = scalar_lea.vmem [#allocation2], %s189
        %p191 = pneg %p42
        %p192 = pneg %p39
        %p193 = pneg %p63
        %p194 = pneg %p60
        %p195 = pneg %p84
        %p196 = pneg %p81
        %p197 = pneg %p110
        %p198 = pneg %p107
        %s199 = sand.u32 %s97, 1
        %s200 = scalar_lea.sflag [#allocation4], %s199
        %s201 = sand.u32 %s97, 1
        %s202 = smul.addr %s201, 16
        %s203 = scalar_lea.vmem [#allocation7], %s202
        %s204 = smul.u32 2, %s21
        %s205 = smul.u32 2, %s21
        %v207 = vld [vmem:[%s177] sm:$0xff]
        %v208 = vld [vmem:[%s177 + $0x8] sm:$0xff]
        %v209 = vpack.c.bf16 %v208, %v207
        %v210 = vld [vmem:[#allocation5] sm:$0xf]
        %v211 = vld [vmem:[#allocation5 + $0x4] sm:$0xf]
        %v212 = vld [vmem:[#allocation5 + $0x8] sm:$0xf]
        %v213 = vld [vmem:[#allocation5 + $0xc] sm:$0xf]
        %v214 = vld [vmem:[#allocation5 + $0x10] sm:$0xf]
        %v215 = vld [vmem:[#allocation5 + $0x14] sm:$0xf]
        %v216 = vld [vmem:[#allocation5 + $0x18] sm:$0xf]
        %v217 = vld [vmem:[#allocation5 + $0x1c] sm:$0xf]
        %v218 = vld [vmem:[#allocation5 + $0x20] sm:$0xf]
        %v219 = vld [vmem:[#allocation5 + $0x24] sm:$0xf]
        %v220 = vld [vmem:[#allocation5 + $0x28] sm:$0xf]
        %v221 = vld [vmem:[#allocation5 + $0x2c] sm:$0xf]
        %v222 = vld [vmem:[#allocation5 + $0x30] sm:$0xf]
        %v223 = vld [vmem:[#allocation5 + $0x34] sm:$0xf]
        %v224 = vld [vmem:[#allocation5 + $0x38] sm:$0xf]
        %v225 = vld [vmem:[#allocation5 + $0x3c] sm:$0xf]
        %v226 = vld [vmem:[%s2] sm:$0x1]
        %v228 = vlaneseq
        %v229 = vshrl.u32 %v228, 7
        %v230 = vsub.s32 0, %v229
        %v231 = vrot.slane %v226, %v230
        %v249 = vunpack.c.l.b16 %v210
        %v250 = vunpack.c.l.b16 %v211
        %v251 = vunpack.c.l.b16 %v212
        %v252 = vunpack.c.l.b16 %v213
        %v253 = vunpack.c.l.b16 %v214
        %v254 = vunpack.c.l.b16 %v215
        %v255 = vunpack.c.l.b16 %v216
        %v256 = vunpack.c.l.b16 %v217
        %v257 = vunpack.c.l.b16 %v218
        %v258 = vunpack.c.l.b16 %v219
        %v259 = vunpack.c.l.b16 %v220
        %v260 = vunpack.c.l.b16 %v221
        %v261 = vunpack.c.l.b16 %v222
        %v262 = vunpack.c.l.b16 %v223
        %v263 = vunpack.c.l.b16 %v224
        %v264 = vunpack.c.l.b16 %v225
        %v265 = vpack.c.b16 %v250, %v249
        %v266 = vpack.c.b16 %v252, %v251
        %v267 = vpack.c.b16 %v254, %v253
        %v268 = vpack.c.b16 %v256, %v255
        %v269 = vpack.c.b16 %v258, %v257
        %v270 = vpack.c.b16 %v260, %v259
        %v271 = vpack.c.b16 %v262, %v261
        %v272 = vpack.c.b16 %v264, %v263
        %281 = vmatprep.subr.bf16.mxu0 0
        %282 = vmatpush1.bf16.msra.mxu0 %v265
        %283 = vmatprep.subr.bf16.mxu0 0
        %284 = vmatpush1.bf16.msra.mxu0 %v266
        %285 = vmatprep.subr.bf16.mxu0 0
        %286 = vmatpush1.bf16.msra.mxu0 %v267
        %287 = vmatprep.subr.bf16.mxu0 0
        %288 = vmatpush1.bf16.msra.mxu0 %v268
        %289 = vmatprep.subr.bf16.mxu0 0
        %290 = vmatpush1.bf16.msra.mxu0 %v269
        %291 = vmatprep.subr.bf16.mxu0 0
        %292 = vmatpush1.bf16.msra.mxu0 %v270
        %293 = vmatprep.subr.bf16.mxu0 0
        %294 = vmatpush1.bf16.msra.mxu0 %v271
        %295 = vmatprep.subr.bf16.mxu0 0
        %296 = vmatpush1.bf16.msra.mxu0 %v272
        %297 = vmatprep.subr.bf16.mxu0 0
        %298 = vmatpush1.bf16.msra.mxu0 0
        %299 = vmatprep.subr.bf16.mxu0 0
        %300 = vmatpush1.bf16.msra.mxu0 0
        %301 = vmatprep.subr.bf16.mxu0 0
        %302 = vmatpush1.bf16.msra.mxu0 0
        %303 = vmatprep.subr.bf16.mxu0 0
        %304 = vmatpush1.bf16.msra.mxu0 0
        %305 = vmatprep.subr.bf16.mxu0 0
        %306 = vmatpush1.bf16.msra.mxu0 0
        %307 = vmatprep.subr.bf16.mxu0 0
        %308 = vmatpush1.bf16.msra.mxu0 0
        %309 = vmatprep.subr.bf16.mxu0 0
        %310 = vmatpush1.bf16.msra.mxu0 0
        %311 = vmatprep.subr.bf16.mxu0 0
        %312 = vmatpush1.bf16.msra.mxu0 0
        %313 = vmatprep.mubr.bf16.mxu0 0
        %314 = vmatmul.mubr.bf16.gmra.mrb[0].mxu0 %v209
        %v315 = vpop.f32.mrb[0].mxu0
        %v316 = vadd.f32 %v231, %v315
        %v317 = vpop.f32.mrb[0].mxu0
        %v318 = vpop.f32.mrb[0].mxu0
        %v319 = vadd.f32 %v231, %v318
        %v320 = vpop.f32.mrb[0].mxu0
        %321 = vdwg.mxu0
        %v322 = vmul.f32 %v207, %v316
        %v323 = vmul.f32 %v208, %v319
        %v324 = vadd.f32 %v322, %v207
        %v325 = vadd.f32 %v323, %v208
        %v326 = vpack.c.bf16 %v325, %v324
        %s327 = scalar_lea.vmem [#allocation5], 64
        %v328 = vld [vmem:[%s327] sm:$0xf]
        %v329 = vld [vmem:[%s327 + $0x4] sm:$0xf]
        %v330 = vld [vmem:[%s327 + $0x8] sm:$0xf]
        %v331 = vld [vmem:[%s327 + $0xc] sm:$0xf]
        %v332 = vld [vmem:[%s327 + $0x10] sm:$0xf]
        %v333 = vld [vmem:[%s327 + $0x14] sm:$0xf]
        %v334 = vld [vmem:[%s327 + $0x18] sm:$0xf]
        %v335 = vld [vmem:[%s327 + $0x1c] sm:$0xf]
        %v336 = vld [vmem:[%s327 + $0x20] sm:$0xf]
        %v337 = vld [vmem:[%s327 + $0x24] sm:$0xf]
        %v338 = vld [vmem:[%s327 + $0x28] sm:$0xf]
        %v339 = vld [vmem:[%s327 + $0x2c] sm:$0xf]
        %v340 = vld [vmem:[%s327 + $0x30] sm:$0xf]
        %v341 = vld [vmem:[%s327 + $0x34] sm:$0xf]
        %v342 = vld [vmem:[%s327 + $0x38] sm:$0xf]
        %v343 = vld [vmem:[%s327 + $0x3c] sm:$0xf]
        %s344 = scalar_lea.vmem %s2, 1
        %v345 = vld [vmem:[%s344] sm:$0x1]
        %v347 = vlaneseq
        %v348 = vshrl.u32 %v347, 7
        %v349 = vsub.s32 0, %v348
        %v350 = vrot.slane %v345, %v349
        %v368 = vunpack.c.l.b16 %v328
        %v369 = vunpack.c.l.b16 %v329
        %v370 = vunpack.c.l.b16 %v330
        %v371 = vunpack.c.l.b16 %v331
        %v372 = vunpack.c.l.b16 %v332
        %v373 = vunpack.c.l.b16 %v333
        %v374 = vunpack.c.l.b16 %v334
        %v375 = vunpack.c.l.b16 %v335
        %v376 = vunpack.c.l.b16 %v336
        %v377 = vunpack.c.l.b16 %v337
        %v378 = vunpack.c.l.b16 %v338
        %v379 = vunpack.c.l.b16 %v339
        %v380 = vunpack.c.l.b16 %v340
        %v381 = vunpack.c.l.b16 %v341
        %v382 = vunpack.c.l.b16 %v342
        %v383 = vunpack.c.l.b16 %v343
        %v384 = vpack.c.b16 %v369, %v368
        %v385 = vpack.c.b16 %v371, %v370
        %v386 = vpack.c.b16 %v373, %v372
        %v387 = vpack.c.b16 %v375, %v374
        %v388 = vpack.c.b16 %v377, %v376
        %v389 = vpack.c.b16 %v379, %v378
        %v390 = vpack.c.b16 %v381, %v380
        %v391 = vpack.c.b16 %v383, %v382
        %400 = vmatprep.subr.bf16.mxu0 0
        %401 = vmatpush1.bf16.msra.mxu0 %v384
        %402 = vmatprep.subr.bf16.mxu0 0
        %403 = vmatpush1.bf16.msra.mxu0 %v385
        %404 = vmatprep.subr.bf16.mxu0 0
        %405 = vmatpush1.bf16.msra.mxu0 %v386
        %406 = vmatprep.subr.bf16.mxu0 0
        %407 = vmatpush1.bf16.msra.mxu0 %v387
        %408 = vmatprep.subr.bf16.mxu0 0
        %409 = vmatpush1.bf16.msra.mxu0 %v388
        %410 = vmatprep.subr.bf16.mxu0 0
        %411 = vmatpush1.bf16.msra.mxu0 %v389
        %412 = vmatprep.subr.bf16.mxu0 0
        %413 = vmatpush1.bf16.msra.mxu0 %v390
        %414 = vmatprep.subr.bf16.mxu0 0
        %415 = vmatpush1.bf16.msra.mxu0 %v391
        %416 = vmatprep.subr.bf16.mxu0 0
        %417 = vmatpush1.bf16.msra.mxu0 0
        %418 = vmatprep.subr.bf16.mxu0 0
        %419 = vmatpush1.bf16.msra.mxu0 0
        %420 = vmatprep.subr.bf16.mxu0 0
        %421 = vmatpush1.bf16.msra.mxu0 0
        %422 = vmatprep.subr.bf16.mxu0 0
        %423 = vmatpush1.bf16.msra.mxu0 0
        %424 = vmatprep.subr.bf16.mxu0 0
        %425 = vmatpush1.bf16.msra.mxu0 0
        %426 = vmatprep.subr.bf16.mxu0 0
        %427 = vmatpush1.bf16.msra.mxu0 0
        %428 = vmatprep.subr.bf16.mxu0 0
        %429 = vmatpush1.bf16.msra.mxu0 0
        %430 = vmatprep.subr.bf16.mxu0 0
        %431 = vmatpush1.bf16.msra.mxu0 0
        %432 = vmatprep.mubr.bf16.mxu0 0
        %433 = vmatmul.mubr.bf16.gmra.mrb[0].mxu0 %v326
        %v434 = vpop.f32.mrb[0].mxu0
        %v435 = vadd.f32 %v350, %v434
        %v436 = vpop.f32.mrb[0].mxu0
        %v437 = vpop.f32.mrb[0].mxu0
        %v438 = vadd.f32 %v350, %v437
        %v439 = vpop.f32.mrb[0].mxu0
        %440 = vdwg.mxu0
        %v441 = vmul.f32 %v207, %v435
        %v442 = vmul.f32 %v208, %v438
        %v443 = vadd.f32 %v441, %v324
        %v444 = vadd.f32 %v442, %v325
        %445 = vst [vmem:[%s203] sm:$0xff] %v443
        %446 = vst [vmem:[%s203 + $0x8] sm:$0xff] %v444
        %s447 = sand.u32 %s97, 1
        %s448 = scalar_lea.sflag [#allocation4], %s447
        %s449 = sand.u32 %s97, 1
        %s450 = smul.addr %s449, 16
        %s451 = scalar_lea.vmem [#allocation7], %s450
        // Predicated region
        $region41: #{tpu_custom_call.1} parent=31 // pred_check
          %p452 = pneg %p107
        $region42: #{tpu_custom_call.1} parent=31 // pred_check_branch
          %454 = sbr.rel (%p452) target = $region44
        $region43: #{tpu_custom_call.1} parent=31 // pred_region
          %s455 = smul.u32 2, %s21
          %s457 = ssub.s32 256, 256
          %458 = vsyncadd %s448, %s457
          %s459 = smul.addr %s455, 128
          %s460 = scalar_lea.hbm %s3, %s459
          %s461 = sshll.u32 %s451, 4
          %s462 = int_to_ptr.vmem [resolvable:$true] %s461
          %467 = dma.vmem_to_hbm [thread:$0]  %s462, 256, %s460, %s448, 128, 128, 8
        $region44: #{tpu_custom_call.1} parent=31 // pred_fallthru
          _
      $region32: #{tpu_custom_call.1} parent=5 // pred_fallthru
        _
      %p468 = scmp.le.s32.totalorder 2, %s16
      // Predicated region
      $region45: #{tpu_custom_call.1} parent=5 // pred_check
        %p469 = pneg %p468
      $region46: #{tpu_custom_call.1} parent=5 // pred_check_branch
        %471 = sbr.rel (%p469) target = $region48
      $region47: #{tpu_custom_call.1} parent=5 // pred_region
        %s472 = ssub.s32 %s16, 2
        // Predicated region
        $region49: #{tpu_custom_call.1} parent=47 // pred_check
          %p473 = pneg %p113
        $region50: #{tpu_custom_call.1} parent=47 // pred_check_branch
          %475 = sbr.rel (%p473) target = $region52
        $region51: #{tpu_custom_call.1} parent=47 // pred_region
          %s476 = sand.u32 %s98, 1
          %s477 = scalar_lea.sflag [#allocation4], %s476
          %s478 = sand.u32 %s98, 1
          %s479 = smul.addr %s478, 16
          %s480 = scalar_lea.vmem [#allocation7], %s479
          %481 = dma.done %s477, 256
        $region52: #{tpu_custom_call.1} parent=47 // pred_fallthru
          _
      $region48: #{tpu_custom_call.1} parent=5 // pred_fallthru
        _
    $region6: #{tpu_custom_call.1} parent=1 // loop_footer
      %s20 = sadd.s32 1, %s16
    $region7: #{tpu_custom_call.1} parent=1 // loop_footer_branch
      %15 = sbr.rel target = $region3
    $region8: #{tpu_custom_call.1} parent=1 // loop_exit
      _
    %482 = vsyncpa [#allocation3], 1
    %s483 = scalar_lea.sflag [#allocation3], 1
    %484 = vsyncpa %s483, 1
    %485 = vsyncpa [#allocation6], 1
    %486 = vsyncpa [#allocation4], 1
    %s487 = scalar_lea.sflag [#allocation4], 1
    %488 = vsyncpa %s487, 1

</llo_original>
